<compile_context>
chip_gen: v7x
topology: tpu7x:2x2x1
jax: 0.10.0
libtpu: 0.0.40
codegen_flags: <defaults>
</compile_context>

<pallas_src>
import functools

import jax
import jax.numpy as jnp
from jax.experimental import pallas as pl
from jax.experimental.pallas import tpu as pltpu


def _mrd_kernel(R, C, cb_ref, adj_ref, x_ref, w_ref, o_ref, h_ref):
    """One batch element per grid step.

    cb_ref  : SMEM (1,)            f32   conv1x1 bias
    adj_ref : VMEM (1, R, N, N)    bf16  all relations for this batch element
    x_ref   : VMEM (1, N, C)       bf16
    w_ref   : VMEM (R*C, C_pad)    bf16  stacked folded weights (resident)
    o_ref   : VMEM (1, N, C_pad)   f32
    h_ref   : VMEM scratch (N, R*C) f32
    """
    x = x_ref[0]                                                 # (N, C) bf16

    # Per-relation diffusion: h_r = adj_r @ x, written into lane block r of H.
    for r in range(R):                                           # R is static -> unrolled
        h_ref[:, r * C:(r + 1) * C] = jnp.dot(
            adj_ref[0, r], x, preferred_element_type=jnp.float32)

    # Per-relation linear projection + 1x1-conv merge over relations, fused into
    # a single lane-dense MXU matmul (contraction dim = R*C).
    out = jnp.dot(h_ref[...].astype(jnp.bfloat16), w_ref[...],
                  preferred_element_type=jnp.float32)            # (N, C_pad) f32

    # Bias + ReLU.
    o_ref[0] = jnp.maximum(out + cb_ref[0], 0.0)


def multi_relational_diffusion(x, adj_list, alpha, transition, conv_w, conv_b):
    """JAX/Pallas equivalent of MultiRelationalDiffusion.forward."""
    B, N, C_in = x.shape
    _, R, _, _ = adj_list.shape
    C_out = transition.shape[-1]
    # The reference module's F.linear(output_r, transition[r].mean(0)) only
    # type-checks when in_channels == out_channels.
    assert C_in == C_out, "reference semantics require in_channels == out_channels"
    C = C_in
    C_pad = ((C_out + 127) // 128) * 128          # lane-dense output width

    # ---- parameter folding (plain JAX, f32) --------------------------------
    alpha_norm = jax.nn.softmax(alpha.astype(jnp.float32), axis=1)     # [R, K]
    s = jnp.sum(alpha_norm, axis=1)                                    # [R] (== 1)
    w_mean = jnp.mean(transition.astype(jnp.float32), axis=1)          # [R, C, C]
    w_t = jnp.swapaxes(w_mean, 1, 2)                                   # [R, C, C]  W_r.T
    cw = conv_w.reshape(R).astype(jnp.float32)                         # [R]
    w_fold = (s * cw)[:, None, None] * w_t                             # [R, C, C]
    w_stack = w_fold.reshape(R * C, C_out)                             # [R*C, C]
    if C_pad != C_out:
        w_stack = jnp.pad(w_stack, ((0, 0), (0, C_pad - C_out)))       # [R*C, C_pad]
    cb = conv_b.reshape(1).astype(jnp.float32)                         # [1]

    kernel = functools.partial(_mrd_kernel, R, C)

    grid_spec = pltpu.PrefetchScalarGridSpec(
        num_scalar_prefetch=0,
        grid=(B,),
        in_specs=[
            pl.BlockSpec(memory_space=pltpu.MemorySpace.SMEM),          # cb
            pl.BlockSpec((1, R, N, N), lambda b: (b, 0, 0, 0)),         # adj (all R)
            pl.BlockSpec((1, N, C), lambda b: (b, 0, 0)),               # x
            pl.BlockSpec((R * C, C_pad), lambda b: (0, 0)),             # W_stack (resident)
        ],
        out_specs=pl.BlockSpec((1, N, C_pad), lambda b: (b, 0, 0)),
        scratch_shapes=[pltpu.VMEM((N, R * C), jnp.float32)],
    )

    flops = 2 * B * R * N * N * C + 2 * B * N * (R * C) * C_pad
    bytes_accessed = (B * R * N * N * 2 + B * N * C * 2
                      + R * C * C_pad * 2 + B * N * C_pad * 4)

    out_pad = pl.pallas_call(
        kernel,
        out_shape=jax.ShapeDtypeStruct((B, N, C_pad), jnp.float32),
        grid_spec=grid_spec,
        compiler_params=pltpu.CompilerParams(
            dimension_semantics=("parallel",)),
        cost_estimate=pl.CostEstimate(
            flops=flops, transcendentals=0, bytes_accessed=bytes_accessed),
    )(cb,
      adj_list.astype(jnp.bfloat16),
      x.astype(jnp.bfloat16),
      w_stack.astype(jnp.bfloat16))

    return out_pad[:, :, :C_out] if C_pad != C_out else out_pad


def _reference(x, adj_list, alpha, transition, conv_w, conv_b):
    """Pure-JAX (f32) transcription of the PyTorch forward for verification."""
    R, K = alpha.shape
    alpha_norm = jax.nn.softmax(alpha, axis=1)
    outs = []
    for r in range(R):
        adj = adj_list[:, r]
        diff = jnp.zeros_like(adj)
        for k in range(K):
            diff = diff + alpha_norm[r, k] * adj
        h = jnp.einsum("bij,bjc->bic", diff, x)
        w_r = transition[r].mean(axis=0)                  # [C_in, C_out]
        out_r = h @ w_r.T                                 # F.linear
        outs.append(out_r)
    stacked = jnp.stack(outs, axis=1)                     # [B, R, N, C]
    cw = conv_w.reshape(R)
    merged = jnp.einsum("r,brnc->bnc", cw, stacked) + conv_b.reshape(())
    return jnp.maximum(merged, 0.0)


if __name__ == "__main__":
    B, N, C, R, K = 2, 16, 32, 4, 5

    key = jax.random.PRNGKey(0)
    k_x, k_adj, k_trans, k_cw, k_cb = jax.random.split(key, 5)

    # Inputs.
    x = jax.random.normal(k_x, (B, N, C), dtype=jnp.float32)
    adj_list = jax.random.uniform(k_adj, (B, R, N, N), dtype=jnp.float32)

    # Deterministic parameter init matching the module's __init__ shapes.
    alpha = jnp.ones((R, K), jnp.float32) / K                                   # ones/K
    transition = jax.random.uniform(k_trans, (R, K, C, C), dtype=jnp.float32)   # rand
    bound = 1.0 / float(jnp.sqrt(float(R)))                                     # Conv2d default
    conv_w = jax.random.uniform(k_cw, (1, R, 1, 1), jnp.float32, -bound, bound)
    conv_b = jax.random.uniform(k_cb, (1,), jnp.float32, -bound, bound)

    out = multi_relational_diffusion(x, adj_list, alpha, transition, conv_w, conv_b)
    out = jax.block_until_ready(out)

    ref = _reference(x, adj_list, alpha, transition, conv_w, conv_b)
    assert out.shape == (B, N, C)

    # bf16 matmul operands (f32 accumulation) -> tolerance commensurate with
    # bf16 rounding of two chained matmuls, relative to output magnitude.
    err = float(jnp.max(jnp.abs(out - ref)))
    scale = float(jnp.max(jnp.abs(ref))) + 1e-6
    assert err <= 2e-2 * scale + 1e-3, f"mismatch vs reference: err={err}, scale={scale}"

    print("KERNEL_OK")
</pallas_src>

<mosaic_0001>
module attributes {stable_mosaic.version = 11 : i64} {
  func.func @_mrd_kernel(%arg0: i32, %arg1: memref<1xf32, #tpu.memory_space<smem>>, %arg2: memref<1x4x16x16xbf16, #tpu.memory_space<vmem>>, %arg3: memref<1x16x32xbf16, #tpu.memory_space<vmem>>, %arg4: memref<128x128xbf16, #tpu.memory_space<vmem>>, %arg5: memref<1x16x128xf32, #tpu.memory_space<vmem>>, %arg6: memref<16x128xf32, #tpu.memory_space<vmem>>) attributes {dimension_semantics = [#tpu.dimension_semantics<parallel>], iteration_bounds = array<i64: 2>, scalar_prefetch = 0 : i64, scratch_operands = 1 : i64, tpu.core_type = #tpu.core_type<tc>, window_params = [{transform_indices = @transform_0, window_bounds = array<i64: 1>}, {transform_indices = @transform_1, window_bounds = array<i64: 1, 4, 16, 16>}, {transform_indices = @transform_2, window_bounds = array<i64: 1, 16, 32>}, {pipeline_mode = #tpu.pipeline_mode<synchronous>, transform_indices = @transform_3, window_bounds = array<i64: 128, 128>}, {transform_indices = @transform_4, window_bounds = array<i64: 1, 16, 128>}]} {
    %c0 = arith.constant 0 : index
    %c0_0 = arith.constant 0 : index
    %c0_1 = arith.constant 0 : index
    %0 = vector.load %arg3[%c0, %c0_0, %c0_1] : memref<1x16x32xbf16, #tpu.memory_space<vmem>>, vector<1x16x32xbf16>
    %1 = vector.shape_cast %0 : vector<1x16x32xbf16> to vector<16x32xbf16>
    %c0_2 = arith.constant 0 : index
    %c0_3 = arith.constant 0 : index
    %c0_4 = arith.constant 0 : index
    %c0_5 = arith.constant 0 : index
    %2 = vector.load %arg2[%c0_2, %c0_3, %c0_4, %c0_5] : memref<1x4x16x16xbf16, #tpu.memory_space<vmem>>, vector<1x1x16x16xbf16>
    %3 = vector.shape_cast %2 : vector<1x1x16x16xbf16> to vector<16x16xbf16>
    %cst = arith.constant dense<0.000000e+00> : vector<16x32xf32>
    %4 = tpu.matmul %3, %1, %cst {dimension_numbers = #tpu.dot_dimension_numbers<[1], [0], [0], [1], [0, 0, 1, 1], [], []>} : vector<16x16xbf16>, vector<16x32xbf16>, vector<16x32xf32> -> vector<16x32xf32>
    %c0_6 = arith.constant 0 : index
    %c0_7 = arith.constant 0 : index
    %5 = vector.load %arg6[%c0_6, %c0_7] : memref<16x128xf32, #tpu.memory_space<vmem>>, vector<16x32xf32>
    tpu.vector_store %arg6[%c0_6, %c0_7], %4 {strides = array<i32>} : memref<16x128xf32, #tpu.memory_space<vmem>>, vector<16x32xf32>,
    %c0_8 = arith.constant 0 : index
    %c1 = arith.constant 1 : index
    %c0_9 = arith.constant 0 : index
    %c0_10 = arith.constant 0 : index
    %6 = vector.load %arg2[%c0_8, %c1, %c0_9, %c0_10] : memref<1x4x16x16xbf16, #tpu.memory_space<vmem>>, vector<1x1x16x16xbf16>
    %7 = vector.shape_cast %6 : vector<1x1x16x16xbf16> to vector<16x16xbf16>
    %cst_11 = arith.constant dense<0.000000e+00> : vector<16x32xf32>
    %8 = tpu.matmul %7, %1, %cst_11 {dimension_numbers = #tpu.dot_dimension_numbers<[1], [0], [0], [1], [0, 0, 1, 1], [], []>} : vector<16x16xbf16>, vector<16x32xbf16>, vector<16x32xf32> -> vector<16x32xf32>
    %c0_12 = arith.constant 0 : index
    %c32 = arith.constant 32 : index
    %9 = vector.load %arg6[%c0_12, %c32] : memref<16x128xf32, #tpu.memory_space<vmem>>, vector<16x32xf32>
    tpu.vector_store %arg6[%c0_12, %c32], %8 {strides = array<i32>} : memref<16x128xf32, #tpu.memory_space<vmem>>, vector<16x32xf32>,
    %c0_13 = arith.constant 0 : index
    %c2 = arith.constant 2 : index
    %c0_14 = arith.constant 0 : index
    %c0_15 = arith.constant 0 : index
    %10 = vector.load %arg2[%c0_13, %c2, %c0_14, %c0_15] : memref<1x4x16x16xbf16, #tpu.memory_space<vmem>>, vector<1x1x16x16xbf16>
    %11 = vector.shape_cast %10 : vector<1x1x16x16xbf16> to vector<16x16xbf16>
    %cst_16 = arith.constant dense<0.000000e+00> : vector<16x32xf32>
    %12 = tpu.matmul %11, %1, %cst_16 {dimension_numbers = #tpu.dot_dimension_numbers<[1], [0], [0], [1], [0, 0, 1, 1], [], []>} : vector<16x16xbf16>, vector<16x32xbf16>, vector<16x32xf32> -> vector<16x32xf32>
    %c0_17 = arith.constant 0 : index
    %c64 = arith.constant 64 : index
    %13 = vector.load %arg6[%c0_17, %c64] : memref<16x128xf32, #tpu.memory_space<vmem>>, vector<16x32xf32>
    tpu.vector_store %arg6[%c0_17, %c64], %12 {strides = array<i32>} : memref<16x128xf32, #tpu.memory_space<vmem>>, vector<16x32xf32>,
    %c0_18 = arith.constant 0 : index
    %c3 = arith.constant 3 : index
    %c0_19 = arith.constant 0 : index
    %c0_20 = arith.constant 0 : index
    %14 = vector.load %arg2[%c0_18, %c3, %c0_19, %c0_20] : memref<1x4x16x16xbf16, #tpu.memory_space<vmem>>, vector<1x1x16x16xbf16>
    %15 = vector.shape_cast %14 : vector<1x1x16x16xbf16> to vector<16x16xbf16>
    %cst_21 = arith.constant dense<0.000000e+00> : vector<16x32xf32>
    %16 = tpu.matmul %15, %1, %cst_21 {dimension_numbers = #tpu.dot_dimension_numbers<[1], [0], [0], [1], [0, 0, 1, 1], [], []>} : vector<16x16xbf16>, vector<16x32xbf16>, vector<16x32xf32> -> vector<16x32xf32>
    %c0_22 = arith.constant 0 : index
    %c96 = arith.constant 96 : index
    %17 = vector.load %arg6[%c0_22, %c96] : memref<16x128xf32, #tpu.memory_space<vmem>>, vector<16x32xf32>
    tpu.vector_store %arg6[%c0_22, %c96], %16 {strides = array<i32>} : memref<16x128xf32, #tpu.memory_space<vmem>>, vector<16x32xf32>,
    %c0_23 = arith.constant 0 : index
    %c0_24 = arith.constant 0 : index
    %18 = vector.load %arg6[%c0_23, %c0_24] : memref<16x128xf32, #tpu.memory_space<vmem>>, vector<16x128xf32>
    %19 = arith.truncf %18 : vector<16x128xf32> to vector<16x128xbf16>
    %c0_25 = arith.constant 0 : index
    %c0_26 = arith.constant 0 : index
    %20 = vector.load %arg4[%c0_25, %c0_26] : memref<128x128xbf16, #tpu.memory_space<vmem>>, vector<128x128xbf16>
    %cst_27 = arith.constant dense<0.000000e+00> : vector<16x128xf32>
    %21 = tpu.matmul %19, %20, %cst_27 {dimension_numbers = #tpu.dot_dimension_numbers<[1], [0], [0], [1], [0, 0, 1, 1], [], []>} : vector<16x128xbf16>, vector<128x128xbf16>, vector<16x128xf32> -> vector<16x128xf32>
    %c0_28 = arith.constant 0 : index
    %22 = memref.load %arg1[%c0_28] : memref<1xf32, #tpu.memory_space<smem>>
    %23 = vector.broadcast %22 : f32 to vector<16x128xf32>
    %24 = arith.addf %21, %23 : vector<16x128xf32>
    %cst_29 = arith.constant 0.000000e+00 : f32
    %25 = vector.broadcast %cst_29 : f32 to vector<16x128xf32>
    %26 = arith.maximumf %24, %25 : vector<16x128xf32>
    %c0_30 = arith.constant 0 : index
    %c0_31 = arith.constant 0 : index
    %c0_32 = arith.constant 0 : index
    %27 = vector.load %arg5[%c0_30, %c0_31, %c0_32] : memref<1x16x128xf32, #tpu.memory_space<vmem>>, vector<1x16x128xf32>
    %28 = vector.shape_cast %27 : vector<1x16x128xf32> to vector<16x128xf32>
    %29 = vector.shape_cast %26 : vector<16x128xf32> to vector<1x16x128xf32>
    tpu.vector_store %arg5[%c0_30, %c0_31, %c0_32], %29 {strides = array<i32>} : memref<1x16x128xf32, #tpu.memory_space<vmem>>, vector<1x16x128xf32>,
    return
  }
  func.func @transform_0(%arg0: i32) -> i32 {
    %c0_i32 = arith.constant 0 : i32
    %c0_i32_0 = arith.constant 0 : i32
    return %c0_i32 : i32
  }
  func.func @transform_1(%arg0: i32) -> (i32, i32, i32, i32) {
    %c0_i32 = arith.constant 0 : i32
    %c0_i32_0 = arith.constant 0 : i32
    %c0_i32_1 = arith.constant 0 : i32
    %c0_i32_2 = arith.constant 0 : i32
    return %arg0, %c0_i32, %c0_i32_0, %c0_i32_1 : i32, i32, i32, i32
  }
  func.func @transform_2(%arg0: i32) -> (i32, i32, i32) {
    %c0_i32 = arith.constant 0 : i32
    %c0_i32_0 = arith.constant 0 : i32
    %c0_i32_1 = arith.constant 0 : i32
    return %arg0, %c0_i32, %c0_i32_0 : i32, i32, i32
  }
  func.func @transform_3(%arg0: i32) -> (i32, i32) {
    %c0_i32 = arith.constant 0 : i32
    %c0_i32_0 = arith.constant 0 : i32
    %c0_i32_1 = arith.constant 0 : i32
    return %c0_i32, %c0_i32_0 : i32, i32
  }
  func.func @transform_4(%arg0: i32) -> (i32, i32, i32) {
    %c0_i32 = arith.constant 0 : i32
    %c0_i32_0 = arith.constant 0 : i32
    %c0_i32_1 = arith.constant 0 : i32
    return %arg0, %c0_i32, %c0_i32_0 : i32, i32, i32
  }
}

</mosaic_0001>

<llo_original>
// kernel: tpu_custom_call.1
$region0: #{tpu_custom_call.1}
  #allocation0 [shape = 'u32[]', space=smem, size = 0x4, offset = 0x4, fixed_abs, tag = 'smem constant byte address 0x4 - core index']
  #allocation1 [shape = 'u32[144,128]{1,0:T(1,128)}', space=vmem, size = 0x12000, scoped, tag = 'internal scratch']
  #allocation2 [shape = 'f32[16,128]{1,0:T(8,128)}', space=vmem, size = 0x2000, scoped, tag = 'scratch operand']
  #allocation3 [shape = 'f32[1]{0:T(128)S(6)}', space=smem, size = 0x200, scoped, tag = 'scoped memory for tpu_custom_call.1']
  %s0 = inlined_call_operand.<no memory space> [shape: f32[1], index: 0, kind: input, shape index: {}]
  %s1 = inlined_call_operand.hbm [shape: bf16[2,4,16,16], index: 1, kind: input, shape index: {}]
  %s2 = inlined_call_operand.hbm [shape: bf16[2,16,32], index: 2, kind: input, shape index: {}]
  %s3 = inlined_call_operand.hbm [shape: bf16[128,128], index: 3, kind: input, shape index: {}]
  %s4 = inlined_call_operand.hbm [shape: f32[2,16,128], index: 4, kind: output, shape index: {}]
  %s5 = sld [smem:[#allocation0]]
  $region61: #{tpu_custom_call.1} parent=0
    _
  %s7 = ssub.s32 1, %s5
  %s8 = scalar_select 0, %s7, %s5
  %9 = sst [smem:[#allocation3]] %s0
  $region1: #{tpu_custom_call.1} parent=0
    #allocation4 [shape = 'u8[32768]{0}', space=vmem, size = 0x8000, scoped, tag = 'input window, operand 1']
    #allocation5 [shape = 's32[2]{0}', space=sflag, size = 0x8, scoped, tag = 'scoped memory for tpu_custom_call.1']
    #allocation6 [shape = 's32[2]{0}', space=sflag, size = 0x8, scoped, tag = 'scoped memory for tpu_custom_call.1']
    #allocation7 [shape = 'u8[8192]{0}', space=vmem, size = 0x2000, scoped, tag = 'input window, operand 2']
    #allocation8 [shape = 's32[2]{0}', space=sflag, size = 0x8, scoped, tag = 'scoped memory for tpu_custom_call.1']
    #allocation9 [shape = 'u8[32768]{0}', space=vmem, size = 0x8000, scoped, tag = 'input window, operand 3, single buffered']
    #allocation10 [shape = 'u8[16384]{0}', space=vmem, size = 0x4000, scoped, tag = 'output window, operand 0']
    %10 = vsyncpa [#allocation5], 0
    %s11 = scalar_lea.sflag [#allocation5], 1
    %12 = vsyncpa %s11, 0
    %13 = vsyncpa [#allocation8], 0
    %s14 = scalar_lea.sflag [#allocation8], 1
    %15 = vsyncpa %s14, 0
    %16 = vsyncpa [#allocation6], 0
    %s17 = scalar_lea.sflag [#allocation6], 1
    %18 = vsyncpa %s17, 0
    loop: start=0, step=1, limit=4
    $region2: #{tpu_custom_call.1} parent=1 // loop_pre_header
      _
    $region3: #{tpu_custom_call.1} parent=1 // loop_header
      %s20 = sphi 0, %s24
      %p21 = scmp.ge.s32.totalorder %s20, 4
      %s28 = sphi 0, %s28
      %s30 = sphi 0, %s28
      %s31 = sphi 0, %s30
      %s45 = sphi 0, %s31
      %s51 = sphi 0, %s53
      %s54 = sphi 0, %s51
      %s55 = sphi 0, %s54
      %s71 = sphi 0, %s55
      %s77 = sphi 0, %s79
      %s80 = sphi 0, %s77
      %s81 = sphi 0, %s80
      %s97 = sphi 0, %s81
      %s101 = sphi 0, %s101
      %s103 = sphi 0, %s101
      %s104 = sphi 0, %s103
      %s118 = sphi 0, %s104
      %s124 = sphi 0, %s126
      %s127 = sphi 0, %s124
      %s128 = sphi 0, %s127
      %s144 = sphi 0, %s128
    $region4: #{tpu_custom_call.1} parent=1 // loop_header_branch
      %23 = sbr.rel (%p21) target = $region8
    $region5: #{tpu_custom_call.1} parent=1 // loop_body
      %s25 = ssub.s32 %s20, 1
      %s26 = ssub.s32 %s20, 2
      %s27 = sadd.s32 %s20, 1
      %s29 = sadd.s32 %s28, 1
      %p32 = scmp.eq.s32.totalorder %s20, 1
      %p33 = scmp.ne.s32.totalorder %s28, %s30
      %p34 = scmp.eq.s32.totalorder %s20, 0
      %p35 = por %p33, %p34
      %p36 = scmp.ne.s32.totalorder %s28, %s30
      %p37 = scmp.eq.s32.totalorder %s25, 1
      %p38 = por %p36, %p37
      %p39 = scmp.ne.s32.totalorder %s30, %s31
      %p40 = scmp.eq.s32.totalorder %s25, 0
      %p41 = por %p39, %p40
      %p42 = scmp.ne.s32.totalorder %s30, %s31
      %p43 = scmp.eq.s32.totalorder %s26, 1
      %p44 = por %p42, %p43
      %p46 = scmp.ne.s32.totalorder %s31, %s45
      %p47 = scmp.eq.s32.totalorder %s26, 0
      %p48 = por %p46, %p47
      %s49 = ssub.s32 %s20, %s27
      %p50 = scmp.eq.s32.totalorder %s49, 0
      %s52 = sadd.s32 %s51, 1
      %s53 = scalar_select %p50, %s51, %s52
      %p56 = pneg %p50
      %p57 = scmp.eq.s32.totalorder %s20, 1
      %p58 = por %p56, %p57
      %p59 = scmp.ne.s32.totalorder %s51, %s54
      %p60 = scmp.eq.s32.totalorder %s20, 0
      %p61 = por %p59, %p60
      %p62 = scmp.ne.s32.totalorder %s51, %s54
      %p63 = scmp.eq.s32.totalorder %s25, 1
      %p64 = por %p62, %p63
      %p65 = scmp.ne.s32.totalorder %s54, %s55
      %p66 = scmp.eq.s32.totalorder %s25, 0
      %p67 = por %p65, %p66
      %p68 = scmp.ne.s32.totalorder %s54, %s55
      %p69 = scmp.eq.s32.totalorder %s26, 1
      %p70 = por %p68, %p69
      %p72 = scmp.ne.s32.totalorder %s55, %s71
      %p73 = scmp.eq.s32.totalorder %s26, 0
      %p74 = por %p72, %p73
      %s75 = ssub.s32 %s20, %s27
      %p76 = scmp.eq.s32.totalorder %s75, 0
      %s78 = sadd.s32 %s77, 1
      %s79 = scalar_select %p76, %s77, %s78
      %p82 = pneg %p76
      %p83 = scmp.eq.s32.totalorder %s20, 1
      %p84 = por %p82, %p83
      %p85 = scmp.ne.s32.totalorder %s77, %s80
      %p86 = scmp.eq.s32.totalorder %s20, 0
      %p87 = por %p85, %p86
      %p88 = scmp.ne.s32.totalorder %s77, %s80
      %p89 = scmp.eq.s32.totalorder %s25, 1
      %p90 = por %p88, %p89
      %p91 = scmp.ne.s32.totalorder %s80, %s81
      %p92 = scmp.eq.s32.totalorder %s25, 0
      %p93 = por %p91, %p92
      %p94 = scmp.ne.s32.totalorder %s80, %s81
      %p95 = scmp.eq.s32.totalorder %s26, 1
      %p96 = por %p94, %p95
      %p98 = scmp.ne.s32.totalorder %s81, %s97
      %p99 = scmp.eq.s32.totalorder %s26, 0
      %p100 = por %p98, %p99
      %s102 = sadd.s32 %s101, 1
      %p105 = scmp.eq.s32.totalorder %s20, 1
      %p106 = scmp.ne.s32.totalorder %s101, %s103
      %p107 = scmp.eq.s32.totalorder %s20, 0
      %p108 = por %p106, %p107
      %p109 = scmp.ne.s32.totalorder %s101, %s103
      %p110 = scmp.eq.s32.totalorder %s25, 1
      %p111 = por %p109, %p110
      %p112 = scmp.ne.s32.totalorder %s103, %s104
      %p113 = scmp.eq.s32.totalorder %s25, 0
      %p114 = por %p112, %p113
      %p115 = scmp.ne.s32.totalorder %s103, %s104
      %p116 = scmp.eq.s32.totalorder %s26, 1
      %p117 = por %p115, %p116
      %p119 = scmp.ne.s32.totalorder %s104, %s118
      %p120 = scmp.eq.s32.totalorder %s26, 0
      %p121 = por %p119, %p120
      %s122 = ssub.s32 %s20, %s27
      %p123 = scmp.eq.s32.totalorder %s122, 0
      %s125 = sadd.s32 %s124, 1
      %s126 = scalar_select %p123, %s124, %s125
      %p129 = pneg %p123
      %p130 = scmp.eq.s32.totalorder %s20, 1
      %p131 = por %p129, %p130
      %p132 = scmp.ne.s32.totalorder %s124, %s127
      %p133 = scmp.eq.s32.totalorder %s20, 0
      %p134 = por %p132, %p133
      %p135 = scmp.ne.s32.totalorder %s124, %s127
      %p136 = scmp.eq.s32.totalorder %s25, 1
      %p137 = por %p135, %p136
      %p138 = scmp.ne.s32.totalorder %s127, %s128
      %p139 = scmp.eq.s32.totalorder %s25, 0
      %p140 = por %p138, %p139
      %p141 = scmp.ne.s32.totalorder %s127, %s128
      %p142 = scmp.eq.s32.totalorder %s26, 1
      %p143 = por %p141, %p142
      %p145 = scmp.ne.s32.totalorder %s128, %s144
      %p146 = scmp.eq.s32.totalorder %s26, 0
      %p147 = por %p145, %p146
      %p148 = scmp.le.s32.totalorder 1, %s20
      %p149 = scmp.lt.s32.totalorder %s20, 3
      %p150 = pnand %p148, %p149
      %p151 = pneg %p150
      // Predicated region
      $region9: #{tpu_custom_call.1} parent=5 // pred_check
        _
      $region10: #{tpu_custom_call.1} parent=5 // pred_check_branch
        %153 = sbr.rel (%p150) target = $region12
      $region11: #{tpu_custom_call.1} parent=5 // pred_region
        %s154 = ssub.s32 %s20, 1
        // Predicated region
        $region13: #{tpu_custom_call.1} parent=11 // pred_check
          %p155 = pneg %p41
        $region14: #{tpu_custom_call.1} parent=11 // pred_check_branch
          %157 = sbr.rel (%p155) target = $region16
        $region15: #{tpu_custom_call.1} parent=11 // pred_region
          _
        $region16: #{tpu_custom_call.1} parent=11 // pred_fallthru
          _
        // Predicated region
        $region17: #{tpu_custom_call.1} parent=11 // pred_check
          %p158 = pneg %p114
        $region18: #{tpu_custom_call.1} parent=11 // pred_check_branch
          %160 = sbr.rel (%p158) target = $region20
        $region19: #{tpu_custom_call.1} parent=11 // pred_region
          %s162 = ssub.s32 1024, 1024
          %163 = vsyncadd [#allocation8], %s162
          %s164 = sshll.u32 [#allocation9], 4
          %s165 = int_to_ptr.vmem [resolvable:$true] %s164
          %170 = dma.hbm_to_vmem [thread:$0]  %s3, 1024, %s165, [#allocation8], 64, 64, 4
        $region20: #{tpu_custom_call.1} parent=11 // pred_fallthru
          _
      $region12: #{tpu_custom_call.1} parent=5 // pred_fallthru
        _
      %p171 = scmp.lt.s32.totalorder %s20, 2
      // Predicated region
      $region21: #{tpu_custom_call.1} parent=5 // pred_check
        %p172 = pneg %p171
      $region22: #{tpu_custom_call.1} parent=5 // pred_check_branch
        %174 = sbr.rel (%p172) target = $region24
      $region23: #{tpu_custom_call.1} parent=5 // pred_region
        // Predicated region
        $region25: #{tpu_custom_call.1} parent=23 // pred_check
          %p175 = pneg %p61
        $region26: #{tpu_custom_call.1} parent=23 // pred_check_branch
          %177 = sbr.rel (%p175) target = $region28
        $region27: #{tpu_custom_call.1} parent=23 // pred_region
          %s178 = sand.u32 %s51, 1
          %s179 = scalar_lea.sflag [#allocation5], %s178
          %s180 = sand.u32 %s51, 1
          %s181 = smul.addr %s180, 32
          %s182 = scalar_lea.vmem [#allocation4], %s181
          %s184 = ssub.s32 512, 512
          %185 = vsyncadd %s179, %s184
          %s186 = smul.addr %s20, 8
          %s187 = smul.addr %s186, 64
          %s188 = scalar_lea.hbm %s1, %s187
          %s189 = sshll.u32 %s182, 4
          %s190 = int_to_ptr.vmem [resolvable:$true] %s189
          %195 = dma.hbm_to_vmem [thread:$0]  %s188, 512, %s190, %s179, 64, 64, 4
        $region28: #{tpu_custom_call.1} parent=23 // pred_fallthru
          _
        // Predicated region
        $region29: #{tpu_custom_call.1} parent=23 // pred_check
          %p196 = pneg %p87
        $region30: #{tpu_custom_call.1} parent=23 // pred_check_branch
          %198 = sbr.rel (%p196) target = $region32
        $region31: #{tpu_custom_call.1} parent=23 // pred_region
          %s199 = sand.u32 %s20, 1
          %s200 = scalar_lea.sflag [#allocation8], %s199
          %s201 = sand.u32 %s77, 1
          %s202 = smul.addr %s201, 8
          %s203 = scalar_lea.vmem [#allocation7], %s202
          %s205 = ssub.s32 128, 128
          %206 = vsyncadd %s200, %s205
          %s207 = smul.addr %s20, 2
          %s208 = smul.addr %s207, 64
          %s209 = scalar_lea.hbm %s2, %s208
          %s210 = sshll.u32 %s203, 4
          %s211 = int_to_ptr.vmem [resolvable:$true] %s210
          %216 = dma.hbm_to_vmem [thread:$0]  %s209, 128, %s211, %s200, 64, 64, 4
        $region32: #{tpu_custom_call.1} parent=23 // pred_fallthru
          _
      $region24: #{tpu_custom_call.1} parent=5 // pred_fallthru
        _
      %p217 = scmp.le.s32.totalorder 1, %s20
      %p218 = scmp.lt.s32.totalorder %s20, 3
      %p219 = pnand %p217, %p218
      %p220 = pneg %p219
      // Predicated region
      $region33: #{tpu_custom_call.1} parent=5 // pred_check
        _
      $region34: #{tpu_custom_call.1} parent=5 // pred_check_branch
        %222 = sbr.rel (%p219) target = $region36
      $region35: #{tpu_custom_call.1} parent=5 // pred_region
        %s223 = ssub.s32 %s20, 1
        %s224 = sand.u32 %s54, 1
        %s225 = scalar_lea.sflag [#allocation5], %s224
        %s226 = sand.u32 %s54, 1
        %s227 = smul.addr %s226, 32
        %s228 = scalar_lea.vmem [#allocation4], %s227
        // Predicated region
        $region37: #{tpu_custom_call.1} parent=35 // pred_check
          %p229 = pneg %p67
        $region38: #{tpu_custom_call.1} parent=35 // pred_check_branch
          %231 = sbr.rel (%p229) target = $region40
        $region39: #{tpu_custom_call.1} parent=35 // pred_region
          %232 = dma.done %s225, 512
        $region40: #{tpu_custom_call.1} parent=35 // pred_fallthru
          _
        %s233 = sand.u32 %s25, 1
        %s234 = scalar_lea.sflag [#allocation8], %s233
        %s235 = sand.u32 %s80, 1
        %s236 = smul.addr %s235, 8
        %s237 = scalar_lea.vmem [#allocation7], %s236
        // Predicated region
        $region41: #{tpu_custom_call.1} parent=35 // pred_check
          %p238 = pneg %p93
        $region42: #{tpu_custom_call.1} parent=35 // pred_check_branch
          %240 = sbr.rel (%p238) target = $region44
        $region43: #{tpu_custom_call.1} parent=35 // pred_region
          %241 = dma.done %s234, 128
        $region44: #{tpu_custom_call.1} parent=35 // pred_fallthru
          _
        // Predicated region
        $region45: #{tpu_custom_call.1} parent=35 // pred_check
          %p242 = pneg %p114
        $region46: #{tpu_custom_call.1} parent=35 // pred_check_branch
          %244 = sbr.rel (%p242) target = $region48
        $region47: #{tpu_custom_call.1} parent=35 // pred_region
          %245 = dma.done [#allocation8], 1024
        $region48: #{tpu_custom_call.1} parent=35 // pred_fallthru
          _
        %p246 = pneg %p41
        %p247 = pneg %p38
        %s248 = sand.u32 %s54, 1
        %s249 = scalar_lea.sflag [#allocation5], %s248
        %s250 = sand.u32 %s54, 1
        %s251 = smul.addr %s250, 32
        %s252 = scalar_lea.vmem [#allocation4], %s251
        %p253 = pneg %p67
        %p254 = pneg %p64
        %s255 = sand.u32 %s25, 1
        %s256 = scalar_lea.sflag [#allocation8], %s255
        %s257 = sand.u32 %s80, 1
        %s258 = smul.addr %s257, 8
        %s259 = scalar_lea.vmem [#allocation7], %s258
        %p260 = pneg %p93
        %p261 = pneg %p90
        %p262 = pneg %p114
        %p263 = pneg %p111
        %p264 = pneg %p140
        %p265 = pneg %p137
        %s266 = sand.u32 %s127, 1
        %s267 = scalar_lea.sflag [#allocation6], %s266
        %s268 = sand.u32 %s127, 1
        %s269 = smul.addr %s268, 16
        %s270 = scalar_lea.vmem [#allocation10], %s269
        %v272 = vld [vmem:[%s237] sm:$0xf]
        %v273 = vld [vmem:[%s237 + $0x4] sm:$0xf]
        %v274 = vld [vmem:[%s228] sm:$0xf]
        %v275 = vld [vmem:[%s228 + $0x4] sm:$0xf]
        %v278 = vunpack.c.l.b16 %v274
        %v279 = vunpack.c.l.b16 %v275
        %v280 = vpack.c.b16 %v279, %v278
        %v283 = vunpack.c.l.b16 %v272
        %v284 = vunpack.c.l.b16 %v273
        %v285 = vpack.c.b16 %v284, %v283
        %vm287 = vcmask 130048
        %v289 = vsel %vm287, %v280, 0
        %291 = vmatprep.subr.bf16.mxu0 0
        %292 = vmatpush1.bf16.msra.mxu0 %v285
        %293 = vmatprep.subr.bf16.mxu0 0
        %294 = vmatpush1.bf16.msra.mxu0 0
        %295 = vmatprep.subr.bf16.mxu0 0
        %296 = vmatpush1.bf16.msra.mxu0 0
        %297 = vmatprep.subr.bf16.mxu0 0
        %298 = vmatpush1.bf16.msra.mxu0 0
        %299 = vmatprep.subr.bf16.mxu0 0
        %300 = vmatpush1.bf16.msra.mxu0 0
        %301 = vmatprep.subr.bf16.mxu0 0
        %302 = vmatpush1.bf16.msra.mxu0 0
        %303 = vmatprep.subr.bf16.mxu0 0
        %304 = vmatpush1.bf16.msra.mxu0 0
        %305 = vmatprep.subr.bf16.mxu0 0
        %306 = vmatpush1.bf16.msra.mxu0 0
        %307 = vmatprep.subr.bf16.mxu0 0
        %308 = vmatpush1.bf16.msra.mxu0 0
        %309 = vmatprep.subr.bf16.mxu0 0
        %310 = vmatpush1.bf16.msra.mxu0 0
        %311 = vmatprep.subr.bf16.mxu0 0
        %312 = vmatpush1.bf16.msra.mxu0 0
        %313 = vmatprep.subr.bf16.mxu0 0
        %314 = vmatpush1.bf16.msra.mxu0 0
        %315 = vmatprep.subr.bf16.mxu0 0
        %316 = vmatpush1.bf16.msra.mxu0 0
        %317 = vmatprep.subr.bf16.mxu0 0
        %318 = vmatpush1.bf16.msra.mxu0 0
        %319 = vmatprep.subr.bf16.mxu0 0
        %320 = vmatpush1.bf16.msra.mxu0 0
        %321 = vmatprep.subr.bf16.mxu0 0
        %322 = vmatpush1.bf16.msra.mxu0 0
        %323 = vmatprep.mubr.bf16.mxu0 0
        %324 = vmatmul.mubr.bf16.gmra.mrb[0].mxu0 %v289
        %v325 = vpop.f32.mrb[0].mxu0
        %v326 = vadd.f32 0.0, %v325
        %v327 = vpop.f32.mrb[0].mxu0
        %v328 = vpop.f32.mrb[0].mxu0
        %v329 = vadd.f32 0.0, %v328
        %v330 = vpop.f32.mrb[0].mxu0
        %331 = vdwg.mxu0
        %vm332 = vcmask 261120
        %333 = vst.msk [vmem:[#allocation2] sm:$0xff] %vm332, %v326
        %334 = vst.msk [vmem:[#allocation2 + $0x8] sm:$0xff] %vm332, %v329
        %s335 = scalar_lea.vmem %s228, 8 [#allocation4]
        %v336 = vld [vmem:[%s335] sm:$0xf]
        %v337 = vld [vmem:[%s335 + $0x4] sm:$0xf]
        %v340 = vunpack.c.l.b16 %v336
        %v341 = vunpack.c.l.b16 %v337
        %v342 = vpack.c.b16 %v341, %v340
        %v344 = vsel %vm287, %v342, 0
        %346 = vmatprep.subr.bf16.mxu0 0
        %347 = vmatpush1.bf16.msra.mxu0 %v285
        %348 = vmatprep.subr.bf16.mxu0 0
        %349 = vmatpush1.bf16.msra.mxu0 0
        %350 = vmatprep.subr.bf16.mxu0 0
        %351 = vmatpush1.bf16.msra.mxu0 0
        %352 = vmatprep.subr.bf16.mxu0 0
        %353 = vmatpush1.bf16.msra.mxu0 0
        %354 = vmatprep.subr.bf16.mxu0 0
        %355 = vmatpush1.bf16.msra.mxu0 0
        %356 = vmatprep.subr.bf16.mxu0 0
        %357 = vmatpush1.bf16.msra.mxu0 0
        %358 = vmatprep.subr.bf16.mxu0 0
        %359 = vmatpush1.bf16.msra.mxu0 0
        %360 = vmatprep.subr.bf16.mxu0 0
        %361 = vmatpush1.bf16.msra.mxu0 0
        %362 = vmatprep.subr.bf16.mxu0 0
        %363 = vmatpush1.bf16.msra.mxu0 0
        %364 = vmatprep.subr.bf16.mxu0 0
        %365 = vmatpush1.bf16.msra.mxu0 0
        %366 = vmatprep.subr.bf16.mxu0 0
        %367 = vmatpush1.bf16.msra.mxu0 0
        %368 = vmatprep.subr.bf16.mxu0 0
        %369 = vmatpush1.bf16.msra.mxu0 0
        %370 = vmatprep.subr.bf16.mxu0 0
        %371 = vmatpush1.bf16.msra.mxu0 0
        %372 = vmatprep.subr.bf16.mxu0 0
        %373 = vmatpush1.bf16.msra.mxu0 0
        %374 = vmatprep.subr.bf16.mxu0 0
        %375 = vmatpush1.bf16.msra.mxu0 0
        %376 = vmatprep.subr.bf16.mxu0 0
        %377 = vmatpush1.bf16.msra.mxu0 0
        %378 = vmatprep.mubr.bf16.mxu0 0
        %379 = vmatmul.mubr.bf16.gmra.mrb[0].mxu0 %v344
        %v380 = vpop.f32.mrb[0].mxu0
        %v381 = vadd.f32 0.0, %v380
        %v382 = vpop.f32.mrb[0].mxu0
        %v383 = vpop.f32.mrb[0].mxu0
        %v384 = vadd.f32 0.0, %v383
        %v385 = vpop.f32.mrb[0].mxu0
        %386 = vdwg.mxu0
        %389 = vrot.lane.b32.xlu0 %v381, 32
        %v390 = vpop.permute.xlu0 %389
        %391 = vrot.lane.b32.xlu0 %v384, 32
        %v392 = vpop.permute.xlu0 %391
        %vm395 = vcmask 523520
        %396 = vst.msk [vmem:[#allocation2] sm:$0xff] %vm395, %v390
        %397 = vst.msk [vmem:[#allocation2 + $0x8] sm:$0xff] %vm395, %v392
        %s398 = scalar_lea.vmem %s228, 16 [#allocation4]
        %v399 = vld [vmem:[%s398] sm:$0xf]
        %v400 = vld [vmem:[%s398 + $0x4] sm:$0xf]
        %v403 = vunpack.c.l.b16 %v399
        %v404 = vunpack.c.l.b16 %v400
        %v405 = vpack.c.b16 %v404, %v403
        %v407 = vsel %vm287, %v405, 0
        %409 = vmatprep.subr.bf16.mxu0 0
        %410 = vmatpush1.bf16.msra.mxu0 %v285
        %411 = vmatprep.subr.bf16.mxu0 0
        %412 = vmatpush1.bf16.msra.mxu0 0
        %413 = vmatprep.subr.bf16.mxu0 0
        %414 = vmatpush1.bf16.msra.mxu0 0
        %415 = vmatprep.subr.bf16.mxu0 0
        %416 = vmatpush1.bf16.msra.mxu0 0
        %417 = vmatprep.subr.bf16.mxu0 0
        %418 = vmatpush1.bf16.msra.mxu0 0
        %419 = vmatprep.subr.bf16.mxu0 0
        %420 = vmatpush1.bf16.msra.mxu0 0
        %421 = vmatprep.subr.bf16.mxu0 0
        %422 = vmatpush1.bf16.msra.mxu0 0
        %423 = vmatprep.subr.bf16.mxu0 0
        %424 = vmatpush1.bf16.msra.mxu0 0
        %425 = vmatprep.subr.bf16.mxu0 0
        %426 = vmatpush1.bf16.msra.mxu0 0
        %427 = vmatprep.subr.bf16.mxu0 0
        %428 = vmatpush1.bf16.msra.mxu0 0
        %429 = vmatprep.subr.bf16.mxu0 0
        %430 = vmatpush1.bf16.msra.mxu0 0
        %431 = vmatprep.subr.bf16.mxu0 0
        %432 = vmatpush1.bf16.msra.mxu0 0
        %433 = vmatprep.subr.bf16.mxu0 0
        %434 = vmatpush1.bf16.msra.mxu0 0
        %435 = vmatprep.subr.bf16.mxu0 0
        %436 = vmatpush1.bf16.msra.mxu0 0
        %437 = vmatprep.subr.bf16.mxu0 0
        %438 = vmatpush1.bf16.msra.mxu0 0
        %439 = vmatprep.subr.bf16.mxu0 0
        %440 = vmatpush1.bf16.msra.mxu0 0
        %441 = vmatprep.mubr.bf16.mxu0 0
        %442 = vmatmul.mubr.bf16.gmra.mrb[0].mxu0 %v407
        %v443 = vpop.f32.mrb[0].mxu0
        %v444 = vadd.f32 0.0, %v443
        %v445 = vpop.f32.mrb[0].mxu0
        %v446 = vpop.f32.mrb[0].mxu0
        %v447 = vadd.f32 0.0, %v446
        %v448 = vpop.f32.mrb[0].mxu0
        %449 = vdwg.mxu0
        %452 = vrot.lane.b32.xlu0 %v444, 64
        %v453 = vpop.permute.xlu0 %452
        %454 = vrot.lane.b32.xlu0 %v447, 64
        %v455 = vpop.permute.xlu0 %454
        %vm458 = vcmask 785920
        %459 = vst.msk [vmem:[#allocation2] sm:$0xff] %vm458, %v453
        %460 = vst.msk [vmem:[#allocation2 + $0x8] sm:$0xff] %vm458, %v455
        %s461 = scalar_lea.vmem %s228, 24 [#allocation4]
        %v462 = vld [vmem:[%s461] sm:$0xf]
        %v463 = vld [vmem:[%s461 + $0x4] sm:$0xf]
        %v466 = vunpack.c.l.b16 %v462
        %v467 = vunpack.c.l.b16 %v463
        %v468 = vpack.c.b16 %v467, %v466
        %v470 = vsel %vm287, %v468, 0
        %472 = vmatprep.subr.bf16.mxu0 0
        %473 = vmatpush1.bf16.msra.mxu0 %v285
        %474 = vmatprep.subr.bf16.mxu0 0
        %475 = vmatpush1.bf16.msra.mxu0 0
        %476 = vmatprep.subr.bf16.mxu0 0
        %477 = vmatpush1.bf16.msra.mxu0 0
        %478 = vmatprep.subr.bf16.mxu0 0
        %479 = vmatpush1.bf16.msra.mxu0 0
        %480 = vmatprep.subr.bf16.mxu0 0
        %481 = vmatpush1.bf16.msra.mxu0 0
        %482 = vmatprep.subr.bf16.mxu0 0
        %483 = vmatpush1.bf16.msra.mxu0 0
        %484 = vmatprep.subr.bf16.mxu0 0
        %485 = vmatpush1.bf16.msra.mxu0 0
        %486 = vmatprep.subr.bf16.mxu0 0
        %487 = vmatpush1.bf16.msra.mxu0 0
        %488 = vmatprep.subr.bf16.mxu0 0
        %489 = vmatpush1.bf16.msra.mxu0 0
        %490 = vmatprep.subr.bf16.mxu0 0
        %491 = vmatpush1.bf16.msra.mxu0 0
        %492 = vmatprep.subr.bf16.mxu0 0
        %493 = vmatpush1.bf16.msra.mxu0 0
        %494 = vmatprep.subr.bf16.mxu0 0
        %495 = vmatpush1.bf16.msra.mxu0 0
        %496 = vmatprep.subr.bf16.mxu0 0
        %497 = vmatpush1.bf16.msra.mxu0 0
        %498 = vmatprep.subr.bf16.mxu0 0
        %499 = vmatpush1.bf16.msra.mxu0 0
        %500 = vmatprep.subr.bf16.mxu0 0
        %501 = vmatpush1.bf16.msra.mxu0 0
        %502 = vmatprep.subr.bf16.mxu0 0
        %503 = vmatpush1.bf16.msra.mxu0 0
        %504 = vmatprep.mubr.bf16.mxu0 0
        %505 = vmatmul.mubr.bf16.gmra.mrb[0].mxu0 %v470
        %v506 = vpop.f32.mrb[0].mxu0
        %v507 = vadd.f32 0.0, %v506
        %v508 = vpop.f32.mrb[0].mxu0
        %v509 = vpop.f32.mrb[0].mxu0
        %v510 = vadd.f32 0.0, %v509
        %v511 = vpop.f32.mrb[0].mxu0
        %512 = vdwg.mxu0
        %515 = vrot.lane.b32.xlu0 %v507, 96
        %v516 = vpop.permute.xlu0 %515
        %517 = vrot.lane.b32.xlu0 %v510, 96
        %v518 = vpop.permute.xlu0 %517
        %vm521 = vcmask 1048320
        %522 = vst.msk [vmem:[#allocation2] sm:$0xff] %vm521, %v516
        %523 = vst.msk [vmem:[#allocation2 + $0x8] sm:$0xff] %vm521, %v518
        %v524 = vld [vmem:[#allocation2] sm:$0xff]
        %v525 = vld [vmem:[#allocation2 + $0x8] sm:$0xff]
        %v526 = vpack.c.bf16 %v525, %v524
        %v527 = vld [vmem:[#allocation9] sm:$0xf]
        %v528 = vld [vmem:[#allocation9 + $0x4] sm:$0xf]
        %v529 = vld [vmem:[#allocation9 + $0x8] sm:$0xf]
        %v530 = vld [vmem:[#allocation9 + $0xc] sm:$0xf]
        %v531 = vld [vmem:[#allocation9 + $0x10] sm:$0xf]
        %v532 = vld [vmem:[#allocation9 + $0x14] sm:$0xf]
        %v533 = vld [vmem:[#allocation9 + $0x18] sm:$0xf]
        %v534 = vld [vmem:[#allocation9 + $0x1c] sm:$0xf]
        %v535 = vld [vmem:[#allocation9 + $0x20] sm:$0xf]
        %v536 = vld [vmem:[#allocation9 + $0x24] sm:$0xf]
        %v537 = vld [vmem:[#allocation9 + $0x28] sm:$0xf]
        %v538 = vld [vmem:[#allocation9 + $0x2c] sm:$0xf]
        %v539 = vld [vmem:[#allocation9 + $0x30] sm:$0xf]
        %v540 = vld [vmem:[#allocation9 + $0x34] sm:$0xf]
        %v541 = vld [vmem:[#allocation9 + $0x38] sm:$0xf]
        %v542 = vld [vmem:[#allocation9 + $0x3c] sm:$0xf]
        %s543 = sld [smem:[#allocation3]]
        %v544 = vstv %s543
        %v561 = vunpack.c.l.b16 %v527
        %v562 = vunpack.c.l.b16 %v528
        %v563 = vunpack.c.l.b16 %v529
        %v564 = vunpack.c.l.b16 %v530
        %v565 = vunpack.c.l.b16 %v531
        %v566 = vunpack.c.l.b16 %v532
        %v567 = vunpack.c.l.b16 %v533
        %v568 = vunpack.c.l.b16 %v534
        %v569 = vunpack.c.l.b16 %v535
        %v570 = vunpack.c.l.b16 %v536
        %v571 = vunpack.c.l.b16 %v537
        %v572 = vunpack.c.l.b16 %v538
        %v573 = vunpack.c.l.b16 %v539
        %v574 = vunpack.c.l.b16 %v540
        %v575 = vunpack.c.l.b16 %v541
        %v576 = vunpack.c.l.b16 %v542
        %v577 = vpack.c.b16 %v562, %v561
        %v578 = vpack.c.b16 %v564, %v563
        %v579 = vpack.c.b16 %v566, %v565
        %v580 = vpack.c.b16 %v568, %v567
        %v581 = vpack.c.b16 %v570, %v569
        %v582 = vpack.c.b16 %v572, %v571
        %v583 = vpack.c.b16 %v574, %v573
        %v584 = vpack.c.b16 %v576, %v575
        %593 = vmatprep.subr.bf16.mxu0 0
        %594 = vmatpush1.bf16.msra.mxu0 %v577
        %595 = vmatprep.subr.bf16.mxu0 0
        %596 = vmatpush1.bf16.msra.mxu0 %v578
        %597 = vmatprep.subr.bf16.mxu0 0
        %598 = vmatpush1.bf16.msra.mxu0 %v579
        %599 = vmatprep.subr.bf16.mxu0 0
        %600 = vmatpush1.bf16.msra.mxu0 %v580
        %601 = vmatprep.subr.bf16.mxu0 0
        %602 = vmatpush1.bf16.msra.mxu0 %v581
        %603 = vmatprep.subr.bf16.mxu0 0
        %604 = vmatpush1.bf16.msra.mxu0 %v582
        %605 = vmatprep.subr.bf16.mxu0 0
        %606 = vmatpush1.bf16.msra.mxu0 %v583
        %607 = vmatprep.subr.bf16.mxu0 0
        %608 = vmatpush1.bf16.msra.mxu0 %v584
        %609 = vmatprep.subr.bf16.mxu0 0
        %610 = vmatpush1.bf16.msra.mxu0 0
        %611 = vmatprep.subr.bf16.mxu0 0
        %612 = vmatpush1.bf16.msra.mxu0 0
        %613 = vmatprep.subr.bf16.mxu0 0
        %614 = vmatpush1.bf16.msra.mxu0 0
        %615 = vmatprep.subr.bf16.mxu0 0
        %616 = vmatpush1.bf16.msra.mxu0 0
        %617 = vmatprep.subr.bf16.mxu0 0
        %618 = vmatpush1.bf16.msra.mxu0 0
        %619 = vmatprep.subr.bf16.mxu0 0
        %620 = vmatpush1.bf16.msra.mxu0 0
        %621 = vmatprep.subr.bf16.mxu0 0
        %622 = vmatpush1.bf16.msra.mxu0 0
        %623 = vmatprep.subr.bf16.mxu0 0
        %624 = vmatpush1.bf16.msra.mxu0 0
        %625 = vmatprep.mubr.bf16.mxu0 0
        %626 = vmatmul.mubr.bf16.gmra.mrb[0].mxu0 %v526
        %v627 = vpop.f32.mrb[0].mxu0
        %v628 = vadd.f32 %v544, %v627
        %v629 = vpop.f32.mrb[0].mxu0
        %v630 = vpop.f32.mrb[0].mxu0
        %v631 = vadd.f32 %v544, %v630
        %v632 = vpop.f32.mrb[0].mxu0
        %633 = vdwg.mxu0
        %v634 = vmax.f32 %v628, 0.0
        %v635 = vmax.f32 %v631, 0.0
        %636 = vst [vmem:[%s270] sm:$0xff] %v634
        %637 = vst [vmem:[%s270 + $0x8] sm:$0xff] %v635
        %s638 = sand.u32 %s127, 1
        %s639 = scalar_lea.sflag [#allocation6], %s638
        %s640 = sand.u32 %s127, 1
        %s641 = smul.addr %s640, 16
        %s642 = scalar_lea.vmem [#allocation10], %s641
        // Predicated region
        $region49: #{tpu_custom_call.1} parent=35 // pred_check
          %p643 = pneg %p137
        $region50: #{tpu_custom_call.1} parent=35 // pred_check_branch
          %645 = sbr.rel (%p643) target = $region52
        $region51: #{tpu_custom_call.1} parent=35 // pred_region
          %s647 = ssub.s32 256, 256
          %648 = vsyncadd %s639, %s647
          %s649 = smul.addr %s25, 2
          %s650 = smul.addr %s649, 128
          %s651 = scalar_lea.hbm %s4, %s650
          %s652 = sshll.u32 %s642, 4
          %s653 = int_to_ptr.vmem [resolvable:$true] %s652
          %658 = dma.vmem_to_hbm [thread:$0]  %s653, 256, %s651, %s639, 128, 128, 8
        $region52: #{tpu_custom_call.1} parent=35 // pred_fallthru
          _
      $region36: #{tpu_custom_call.1} parent=5 // pred_fallthru
        _
      %p659 = scmp.le.s32.totalorder 2, %s20
      // Predicated region
      $region53: #{tpu_custom_call.1} parent=5 // pred_check
        %p660 = pneg %p659
      $region54: #{tpu_custom_call.1} parent=5 // pred_check_branch
        %662 = sbr.rel (%p660) target = $region56
      $region55: #{tpu_custom_call.1} parent=5 // pred_region
        %s663 = ssub.s32 %s20, 2
        // Predicated region
        $region57: #{tpu_custom_call.1} parent=55 // pred_check
          %p664 = pneg %p143
        $region58: #{tpu_custom_call.1} parent=55 // pred_check_branch
          %666 = sbr.rel (%p664) target = $region60
        $region59: #{tpu_custom_call.1} parent=55 // pred_region
          %s667 = sand.u32 %s128, 1
          %s668 = scalar_lea.sflag [#allocation6], %s667
          %s669 = sand.u32 %s128, 1
          %s670 = smul.addr %s669, 16
          %s671 = scalar_lea.vmem [#allocation10], %s670
          %672 = dma.done %s668, 256
        $region60: #{tpu_custom_call.1} parent=55 // pred_fallthru
          _
      $region56: #{tpu_custom_call.1} parent=5 // pred_fallthru
        _
    $region6: #{tpu_custom_call.1} parent=1 // loop_footer
      %s24 = sadd.s32 1, %s20
    $region7: #{tpu_custom_call.1} parent=1 // loop_footer_branch
      %19 = sbr.rel target = $region3
    $region8: #{tpu_custom_call.1} parent=1 // loop_exit
      _
    %673 = vsyncpa [#allocation5], 1
    %s674 = scalar_lea.sflag [#allocation5], 1
    %675 = vsyncpa %s674, 1
    %676 = vsyncpa [#allocation8], 1
    %s677 = scalar_lea.sflag [#allocation8], 1
    %678 = vsyncpa %s677, 1
    %679 = vsyncpa [#allocation6], 1
    %s680 = scalar_lea.sflag [#allocation6], 1
    %681 = vsyncpa %s680, 1

</llo_original>
